<compile_context>
chip_gen: v6e
topology: v6e:2x2x1
jax: 0.10.0
libtpu: 0.0.40
codegen_flags: <defaults>
</compile_context>

<pallas_src>
import jax
import jax.numpy as jnp
from jax.experimental import pallas as pl
from jax.experimental.pallas import tpu as pltpu


def _round_up(a, b):
    return (a + b - 1) // b * b


def _conv_stats_kernel(x_ref, w_ref, conv_ref, sum_ref, ssq_ref):
    # x_ref:   (TM, KPAD)    bf16 im2col tile
    # w_ref:   (KPAD, CPAD)  bf16 folded conv weights
    # conv_ref:(TM, CPAD)    f32 conv output tile
    # sum_ref: (1, CPAD)     f32 resident per-channel sum accumulator
    # ssq_ref: (1, CPAD)     f32 resident per-channel sum-of-squares accumulator
    @pl.when(pl.program_id(0) == 0)
    def _():
        sum_ref[...] = jnp.zeros_like(sum_ref)
        ssq_ref[...] = jnp.zeros_like(ssq_ref)

    acc = jnp.dot(x_ref[...], w_ref[...], preferred_element_type=jnp.float32)
    conv_ref[...] = acc
    sum_ref[...] += jnp.sum(acc, axis=0, keepdims=True)
    ssq_ref[...] += jnp.sum(acc * acc, axis=0, keepdims=True)


def _bn_relu_kernel(conv_ref, scale_ref, shift_ref, o_ref):
    # conv_ref: (TM, CPAD) f32; scale/shift: (1, CPAD) f32 broadcast over rows.
    y = conv_ref[...] * scale_ref[...] + shift_ref[...]
    o_ref[...] = jnp.maximum(y, 0.0).astype(o_ref.dtype)


def conv_block_forward(x_nchw, w_oihw, bias, gamma, beta, eps=1e-5, tm=512):
    """Pallas implementation of conv_block.forward (stride=1, padding=0).

    `bias` is accepted for interface parity but intentionally unused: BN's
    training-mode mean subtraction cancels a per-channel constant exactly.
    """
    del bias
    N, CIN, H, W = x_nchw.shape
    COUT, CIN2, KH, KW = w_oihw.shape
    assert CIN == CIN2
    HO, WO = H - KH + 1, W - KW + 1
    npix = N * HO * WO
    K = KH * KW * CIN
    KPAD = _round_up(K, 128)
    CPAD = _round_up(COUT, 128)

    # pixel tiling (rows must be (8)-aligned; keep tiles small for small inputs)
    tm = min(tm, _round_up(npix, 128))
    npix_pad = _round_up(npix, tm)
    grid_m = npix_pad // tm

    # --- plain-JAX glue: layout + im2col (slicing/reshape only) --------------
    x_nhwc = jnp.transpose(x_nchw, (0, 2, 3, 1)).astype(jnp.float32)
    cols = [x_nhwc[:, kh:kh + HO, kw:kw + WO, :].reshape(npix, CIN)
            for kh in range(KH) for kw in range(KW)]
    x2d = jnp.concatenate(cols, axis=-1).astype(jnp.bfloat16)        # (npix, K)
    x2d = jnp.pad(x2d, ((0, npix_pad - npix), (0, KPAD - K)))        # zero pad

    w_mat = jnp.transpose(w_oihw, (2, 3, 1, 0)).reshape(K, COUT)
    w_mat = jnp.pad(w_mat.astype(jnp.bfloat16),
                    ((0, KPAD - K), (0, CPAD - COUT)))               # (KPAD, CPAD)

    vmem_limit = 32 * 1024 * 1024

    # --- pass 1: conv (single K=KPAD matmul per tile) + global sum / sumsq ---
    cost_a = pl.CostEstimate(
        flops=2 * npix_pad * KPAD * CPAD,
        transcendentals=0,
        bytes_accessed=(x2d.size * 2 + w_mat.size * 2
                        + npix_pad * CPAD * 4 + 2 * CPAD * 4))
    conv2d, csum, cssq = pl.pallas_call(
        _conv_stats_kernel,
        out_shape=(jax.ShapeDtypeStruct((npix_pad, CPAD), jnp.float32),
                   jax.ShapeDtypeStruct((1, CPAD), jnp.float32),
                   jax.ShapeDtypeStruct((1, CPAD), jnp.float32)),
        grid=(grid_m,),
        in_specs=[pl.BlockSpec((tm, KPAD), lambda i: (i, 0)),
                  pl.BlockSpec((KPAD, CPAD), lambda i: (0, 0))],
        out_specs=(pl.BlockSpec((tm, CPAD), lambda i: (i, 0)),
                   pl.BlockSpec((1, CPAD), lambda i: (0, 0)),
                   pl.BlockSpec((1, CPAD), lambda i: (0, 0))),
        compiler_params=pltpu.CompilerParams(
            dimension_semantics=("arbitrary",),
            vmem_limit_bytes=vmem_limit),
        cost_estimate=cost_a,
    )(x2d, w_mat)

    # --- finalize BN stats (COUT-sized math; negligible) ---------------------
    inv_n = 1.0 / float(npix)
    mean = csum * inv_n
    var = cssq * inv_n - mean * mean                                  # biased
    g2 = jnp.pad(gamma.astype(jnp.float32), (0, CPAD - COUT)).reshape(1, CPAD)
    b2 = jnp.pad(beta.astype(jnp.float32), (0, CPAD - COUT)).reshape(1, CPAD)
    scale = g2 * jax.lax.rsqrt(var + eps)
    shift = b2 - mean * scale

    # --- pass 2: affine + ReLU (parallel over pixel tiles) -------------------
    cost_b = pl.CostEstimate(
        flops=3 * npix_pad * CPAD,
        transcendentals=0,
        bytes_accessed=2 * npix_pad * CPAD * 4 + 2 * CPAD * 4)
    out2d = pl.pallas_call(
        _bn_relu_kernel,
        out_shape=jax.ShapeDtypeStruct((npix_pad, CPAD), jnp.float32),
        grid=(grid_m,),
        in_specs=[pl.BlockSpec((tm, CPAD), lambda i: (i, 0)),
                  pl.BlockSpec((1, CPAD), lambda i: (0, 0)),
                  pl.BlockSpec((1, CPAD), lambda i: (0, 0))],
        out_specs=pl.BlockSpec((tm, CPAD), lambda i: (i, 0)),
        compiler_params=pltpu.CompilerParams(
            dimension_semantics=("parallel",),
            vmem_limit_bytes=vmem_limit),
        cost_estimate=cost_b,
    )(conv2d, scale, shift)

    # back to PyTorch NCHW output convention
    out = out2d[:npix, :COUT].reshape(N, HO, WO, COUT)
    return jnp.transpose(out, (0, 3, 1, 2))


def _reference(x, w, b, gamma, beta, eps=1e-5):
    # Conv inputs rounded to bf16 to mirror the kernel's bf16 MXU operands
    # (accumulation in f32 on both sides), so the comparison stays tight.
    xr = x.astype(jnp.bfloat16).astype(jnp.float32)
    wr = w.astype(jnp.bfloat16).astype(jnp.float32)
    y = jax.lax.conv_general_dilated(
        xr, wr, window_strides=(1, 1), padding="VALID",
        dimension_numbers=("NCHW", "OIHW", "NCHW"),
        precision=jax.lax.Precision.HIGHEST)
    y = y + b[None, :, None, None]
    mean = jnp.mean(y, axis=(0, 2, 3), keepdims=True)
    var = jnp.mean((y - mean) ** 2, axis=(0, 2, 3), keepdims=True)
    y = (y - mean) * jax.lax.rsqrt(var + eps)
    y = y * gamma[None, :, None, None] + beta[None, :, None, None]
    return jnp.maximum(y, 0.0)


if __name__ == "__main__":
    key = jax.random.PRNGKey(0)
    k_x, k_w, k_b, k_g, k_bt = jax.random.split(key, 5)

    N, CIN, H, W = 2, 4, 16, 16
    COUT, KSIZE = 8, 5

    x = jax.random.normal(k_x, (N, CIN, H, W), dtype=jnp.float32)
    # Conv2d params (PyTorch shapes): weight (COUT, CIN, 5, 5), bias (COUT,)
    fan_in = CIN * KSIZE * KSIZE
    bound = 1.0 / (fan_in ** 0.5)
    w = jax.random.uniform(k_w, (COUT, CIN, KSIZE, KSIZE),
                           minval=-bound, maxval=bound, dtype=jnp.float32)
    b = jax.random.uniform(k_b, (COUT,), minval=-bound, maxval=bound,
                           dtype=jnp.float32)
    # BatchNorm2d affine params (non-trivial deterministic values)
    gamma = 1.0 + 0.1 * jax.random.normal(k_g, (COUT,), dtype=jnp.float32)
    beta = 0.1 * jax.random.normal(k_bt, (COUT,), dtype=jnp.float32)

    out = jax.block_until_ready(conv_block_forward(x, w, b, gamma, beta))
    ref = jax.block_until_ready(_reference(x, w, b, gamma, beta))

    assert out.shape == (N, COUT, H - KSIZE + 1, W - KSIZE + 1)
    max_err = float(jnp.max(jnp.abs(out - ref)))
    assert jnp.allclose(out, ref, atol=2e-3, rtol=2e-3), max_err

    print("KERNEL_OK")
</pallas_src>

<mosaic_0001>
module attributes {stable_mosaic.version = 11 : i64} {
  func.func @_conv_stats_kernel(%arg0: i32, %arg1: memref<384x128xbf16, #tpu.memory_space<vmem>>, %arg2: memref<128x128xbf16, #tpu.memory_space<vmem>>, %arg3: memref<384x128xf32, #tpu.memory_space<vmem>>, %arg4: memref<1x128xf32, #tpu.memory_space<vmem>>, %arg5: memref<1x128xf32, #tpu.memory_space<vmem>>) attributes {dimension_semantics = [#tpu.dimension_semantics<arbitrary>], iteration_bounds = array<i64: 1>, scalar_prefetch = 0 : i64, scratch_operands = 0 : i64, tpu.core_type = #tpu.core_type<tc>, window_params = [{transform_indices = @transform_0, window_bounds = array<i64: 384, 128>}, {pipeline_mode = #tpu.pipeline_mode<synchronous>, transform_indices = @transform_1, window_bounds = array<i64: 128, 128>}, {transform_indices = @transform_2, window_bounds = array<i64: 384, 128>}, {pipeline_mode = #tpu.pipeline_mode<synchronous>, transform_indices = @transform_3, window_bounds = array<i64: 1, 128>}, {pipeline_mode = #tpu.pipeline_mode<synchronous>, transform_indices = @transform_4, window_bounds = array<i64: 1, 128>}]} {
    %c0_i32 = arith.constant 0 : i32
    %0 = arith.cmpi eq, %arg0, %c0_i32 : i32
    %1 = arith.extui %0 : i1 to i32
    %c0_i32_0 = arith.constant 0 : i32
    %2 = arith.cmpi ne, %1, %c0_i32_0 : i32
    scf.if %2 {
      %cst_16 = arith.constant 0.000000e+00 : f32
      %18 = vector.broadcast %cst_16 : f32 to vector<1x128xf32>
      %c0_17 = arith.constant 0 : index
      %c0_18 = arith.constant 0 : index
      %19 = vector.load %arg4[%c0_17, %c0_18] : memref<1x128xf32, #tpu.memory_space<vmem>>, vector<1x128xf32>
      tpu.vector_store %arg4[%c0_17, %c0_18], %18 {strides = array<i32>} : memref<1x128xf32, #tpu.memory_space<vmem>>, vector<1x128xf32>,
      %cst_19 = arith.constant 0.000000e+00 : f32
      %20 = vector.broadcast %cst_19 : f32 to vector<1x128xf32>
      %c0_20 = arith.constant 0 : index
      %c0_21 = arith.constant 0 : index
      %21 = vector.load %arg5[%c0_20, %c0_21] : memref<1x128xf32, #tpu.memory_space<vmem>>, vector<1x128xf32>
      tpu.vector_store %arg5[%c0_20, %c0_21], %20 {strides = array<i32>} : memref<1x128xf32, #tpu.memory_space<vmem>>, vector<1x128xf32>,
    } else {
    }
    %c0 = arith.constant 0 : index
    %c0_1 = arith.constant 0 : index
    %3 = vector.load %arg1[%c0, %c0_1] : memref<384x128xbf16, #tpu.memory_space<vmem>>, vector<384x128xbf16>
    %c0_2 = arith.constant 0 : index
    %c0_3 = arith.constant 0 : index
    %4 = vector.load %arg2[%c0_2, %c0_3] : memref<128x128xbf16, #tpu.memory_space<vmem>>, vector<128x128xbf16>
    %cst = arith.constant dense<0.000000e+00> : vector<384x128xf32>
    %5 = tpu.matmul %3, %4, %cst {dimension_numbers = #tpu.dot_dimension_numbers<[1], [0], [0], [1], [0, 0, 1, 1], [], []>} : vector<384x128xbf16>, vector<128x128xbf16>, vector<384x128xf32> -> vector<384x128xf32>
    %c0_4 = arith.constant 0 : index
    %c0_5 = arith.constant 0 : index
    %6 = vector.load %arg3[%c0_4, %c0_5] : memref<384x128xf32, #tpu.memory_space<vmem>>, vector<384x128xf32>
    tpu.vector_store %arg3[%c0_4, %c0_5], %5 {strides = array<i32>} : memref<384x128xf32, #tpu.memory_space<vmem>>, vector<384x128xf32>,
    %c0_6 = arith.constant 0 : index
    %c0_7 = arith.constant 0 : index
    %7 = vector.load %arg4[%c0_6, %c0_7] : memref<1x128xf32, #tpu.memory_space<vmem>>, vector<1x128xf32>
    %cst_8 = arith.constant dense<0.000000e+00> : vector<128xf32>
    %8 = vector.multi_reduction <add>, %5, %cst_8 [0] : vector<384x128xf32> to vector<128xf32>
    %9 = vector.shape_cast %8 : vector<128xf32> to vector<1x128xf32>
    %10 = arith.addf %7, %9 : vector<1x128xf32>
    %c0_9 = arith.constant 0 : index
    %c0_10 = arith.constant 0 : index
    %11 = vector.load %arg4[%c0_9, %c0_10] : memref<1x128xf32, #tpu.memory_space<vmem>>, vector<1x128xf32>
    tpu.vector_store %arg4[%c0_9, %c0_10], %10 {strides = array<i32>} : memref<1x128xf32, #tpu.memory_space<vmem>>, vector<1x128xf32>,
    %c0_11 = arith.constant 0 : index
    %c0_12 = arith.constant 0 : index
    %12 = vector.load %arg5[%c0_11, %c0_12] : memref<1x128xf32, #tpu.memory_space<vmem>>, vector<1x128xf32>
    %13 = arith.mulf %5, %5 : vector<384x128xf32>
    %cst_13 = arith.constant dense<0.000000e+00> : vector<128xf32>
    %14 = vector.multi_reduction <add>, %13, %cst_13 [0] : vector<384x128xf32> to vector<128xf32>
    %15 = vector.shape_cast %14 : vector<128xf32> to vector<1x128xf32>
    %16 = arith.addf %12, %15 : vector<1x128xf32>
    %c0_14 = arith.constant 0 : index
    %c0_15 = arith.constant 0 : index
    %17 = vector.load %arg5[%c0_14, %c0_15] : memref<1x128xf32, #tpu.memory_space<vmem>>, vector<1x128xf32>
    tpu.vector_store %arg5[%c0_14, %c0_15], %16 {strides = array<i32>} : memref<1x128xf32, #tpu.memory_space<vmem>>, vector<1x128xf32>,
    return
  }
  func.func @transform_0(%arg0: i32) -> (i32, i32) {
    %c0_i32 = arith.constant 0 : i32
    %c0_i32_0 = arith.constant 0 : i32
    return %arg0, %c0_i32 : i32, i32
  }
  func.func @transform_1(%arg0: i32) -> (i32, i32) {
    %c0_i32 = arith.constant 0 : i32
    %c0_i32_0 = arith.constant 0 : i32
    %c0_i32_1 = arith.constant 0 : i32
    return %c0_i32, %c0_i32_0 : i32, i32
  }
  func.func @transform_2(%arg0: i32) -> (i32, i32) {
    %c0_i32 = arith.constant 0 : i32
    %c0_i32_0 = arith.constant 0 : i32
    return %arg0, %c0_i32 : i32, i32
  }
  func.func @transform_3(%arg0: i32) -> (i32, i32) {
    %c0_i32 = arith.constant 0 : i32
    %c0_i32_0 = arith.constant 0 : i32
    %c0_i32_1 = arith.constant 0 : i32
    return %c0_i32, %c0_i32_0 : i32, i32
  }
  func.func @transform_4(%arg0: i32) -> (i32, i32) {
    %c0_i32 = arith.constant 0 : i32
    %c0_i32_0 = arith.constant 0 : i32
    %c0_i32_1 = arith.constant 0 : i32
    return %c0_i32, %c0_i32_0 : i32, i32
  }
}

</mosaic_0001>

<llo_original>
// kernel: tpu_custom_call.1
$region0: #{tpu_custom_call.1}
  #allocation0 [shape = 'u32[]', space=smem, size = 0x4, offset = 0x4, fixed_abs, tag = 'smem constant byte address 0x4 - core index']
  #allocation1 [shape = 'u32[144,128]{1,0:T(1,128)}', space=vmem, size = 0x12000, scoped, tag = 'internal scratch']
  %s0 = inlined_call_operand.hbm [shape: bf16[384,128], index: 0, kind: input, shape index: {}]
  %s1 = inlined_call_operand.hbm [shape: bf16[128,128], index: 1, kind: input, shape index: {}]
  %s2 = inlined_call_operand.hbm [shape: f32[384,128], index: 2, kind: output, shape index: {0}]
  %s3 = inlined_call_operand.hbm [shape: f32[1,128], index: 3, kind: output, shape index: {1}]
  %s4 = inlined_call_operand.hbm [shape: f32[1,128], index: 4, kind: output, shape index: {2}]
  %5 = xla_tuple %s2, %s3, %s4
  %s6 = sld [smem:[#allocation0]]
  $region46: #{tpu_custom_call.1} parent=0
    _
  %s8 = ssub.s32 1, %s6
  %s9 = scalar_select 0, %s8, %s6
  $region1: #{tpu_custom_call.1} parent=0
    #allocation2 [shape = 'u8[98304]{0}', space=vmem, size = 0x18000, scoped, tag = 'input window, operand 0, single buffered']
    #allocation3 [shape = 's32[1]{0}', space=sflag, size = 0x4, scoped, tag = 'scoped memory for tpu_custom_call.1']
    #allocation4 [shape = 's32[1]{0}', space=sflag, size = 0x4, scoped, tag = 'scoped memory for tpu_custom_call.1']
    #allocation5 [shape = 'u8[32768]{0}', space=vmem, size = 0x8000, scoped, tag = 'input window, operand 1, single buffered']
    #allocation6 [shape = 's32[1]{0}', space=sflag, size = 0x4, scoped, tag = 'scoped memory for tpu_custom_call.1']
    #allocation7 [shape = 'u8[196608]{0}', space=vmem, size = 0x30000, scoped, tag = 'output window, operand 0, single buffered']
    #allocation8 [shape = 'u8[512]{0}', space=vmem, size = 0x400, scoped, tag = 'output window, operand 1, single buffered']
    #allocation9 [shape = 's32[1]{0}', space=sflag, size = 0x4, scoped, tag = 'scoped memory for tpu_custom_call.1']
    #allocation10 [shape = 'u8[512]{0}', space=vmem, size = 0x400, scoped, tag = 'output window, operand 2, single buffered']
    %10 = vsyncpa [#allocation3], 0
    %11 = vsyncpa [#allocation6], 0
    %12 = vsyncpa [#allocation4], 0
    %13 = vsyncpa [#allocation9], 0
    // Predicated region
    $region2: #{tpu_custom_call.1} parent=1 // pred_check
      _
    $region3: #{tpu_custom_call.1} parent=1 // pred_check_branch
      %15 = sbr.rel (0) target = $region5
    $region4: #{tpu_custom_call.1} parent=1 // pred_region
      %s17 = ssub.s32 3072, 3072
      %18 = vsyncadd [#allocation3], %s17
      %s19 = sshll.u32 [#allocation2], 4
      %s20 = int_to_ptr.vmem [resolvable:$true] %s19
      %25 = dma.hbm_to_vmem [thread:$0]  %s0, 3072, %s20, [#allocation3], 64, 64, 4
    $region5: #{tpu_custom_call.1} parent=1 // pred_fallthru
      _
    // Predicated region
    $region6: #{tpu_custom_call.1} parent=1 // pred_check
      _
    $region7: #{tpu_custom_call.1} parent=1 // pred_check_branch
      %27 = sbr.rel (0) target = $region9
    $region8: #{tpu_custom_call.1} parent=1 // pred_region
      %s29 = ssub.s32 1024, 1024
      %30 = vsyncadd [#allocation6], %s29
      %s31 = sshll.u32 [#allocation5], 4
      %s32 = int_to_ptr.vmem [resolvable:$true] %s31
      %37 = dma.hbm_to_vmem [thread:$0]  %s1, 1024, %s32, [#allocation6], 64, 64, 4
    $region9: #{tpu_custom_call.1} parent=1 // pred_fallthru
      _
    // Predicated region
    $region10: #{tpu_custom_call.1} parent=1 // pred_check
      _
    $region11: #{tpu_custom_call.1} parent=1 // pred_check_branch
      %39 = sbr.rel (0) target = $region13
    $region12: #{tpu_custom_call.1} parent=1 // pred_region
      %40 = dma.done [#allocation3], 3072
    $region13: #{tpu_custom_call.1} parent=1 // pred_fallthru
      _
    // Predicated region
    $region14: #{tpu_custom_call.1} parent=1 // pred_check
      _
    $region15: #{tpu_custom_call.1} parent=1 // pred_check_branch
      %42 = sbr.rel (0) target = $region17
    $region16: #{tpu_custom_call.1} parent=1 // pred_region
      %43 = dma.done [#allocation6], 1024
    $region17: #{tpu_custom_call.1} parent=1 // pred_fallthru
      _
    %p45 = scmp.eq.s32.totalorder 0, 0
    // Predicated region
    $region18: #{tpu_custom_call.1} parent=1 // pred_check
      %p46 = pneg %p45
    $region19: #{tpu_custom_call.1} parent=1 // pred_check_branch
      %48 = sbr.rel (%p46) target = $region21
    $region20: #{tpu_custom_call.1} parent=1 // pred_region
      %49 = vst [vmem:[#allocation8] sm:$0x1] 0.0
      %50 = vst [vmem:[#allocation10] sm:$0x1] 0.0
    $region21: #{tpu_custom_call.1} parent=1 // pred_fallthru
      _
    %v51 = vld [vmem:[#allocation2] sm:$0xf]
    %v52 = vld [vmem:[#allocation2 + $0x4] sm:$0xf]
    %v53 = vld [vmem:[#allocation2 + $0x8] sm:$0xf]
    %v54 = vld [vmem:[#allocation2 + $0xc] sm:$0xf]
    %v55 = vld [vmem:[#allocation2 + $0x10] sm:$0xf]
    %v56 = vld [vmem:[#allocation2 + $0x14] sm:$0xf]
    %v57 = vld [vmem:[#allocation2 + $0x18] sm:$0xf]
    %v58 = vld [vmem:[#allocation2 + $0x1c] sm:$0xf]
    %v59 = vld [vmem:[#allocation2 + $0x20] sm:$0xf]
    %v60 = vld [vmem:[#allocation2 + $0x24] sm:$0xf]
    %v61 = vld [vmem:[#allocation2 + $0x28] sm:$0xf]
    %v62 = vld [vmem:[#allocation2 + $0x2c] sm:$0xf]
    %v63 = vld [vmem:[#allocation2 + $0x30] sm:$0xf]
    %v64 = vld [vmem:[#allocation2 + $0x34] sm:$0xf]
    %v65 = vld [vmem:[#allocation2 + $0x38] sm:$0xf]
    %v66 = vld [vmem:[#allocation2 + $0x3c] sm:$0xf]
    %v67 = vld [vmem:[#allocation2 + $0x40] sm:$0xf]
    %v68 = vld [vmem:[#allocation2 + $0x44] sm:$0xf]
    %v69 = vld [vmem:[#allocation2 + $0x48] sm:$0xf]
    %v70 = vld [vmem:[#allocation2 + $0x4c] sm:$0xf]
    %v71 = vld [vmem:[#allocation2 + $0x50] sm:$0xf]
    %v72 = vld [vmem:[#allocation2 + $0x54] sm:$0xf]
    %v73 = vld [vmem:[#allocation2 + $0x58] sm:$0xf]
    %v74 = vld [vmem:[#allocation2 + $0x5c] sm:$0xf]
    %v75 = vld [vmem:[#allocation2 + $0x60] sm:$0xf]
    %v76 = vld [vmem:[#allocation2 + $0x64] sm:$0xf]
    %v77 = vld [vmem:[#allocation2 + $0x68] sm:$0xf]
    %v78 = vld [vmem:[#allocation2 + $0x6c] sm:$0xf]
    %v79 = vld [vmem:[#allocation2 + $0x70] sm:$0xf]
    %v80 = vld [vmem:[#allocation2 + $0x74] sm:$0xf]
    %v81 = vld [vmem:[#allocation2 + $0x78] sm:$0xf]
    %v82 = vld [vmem:[#allocation2 + $0x7c] sm:$0xf]
    %v83 = vld [vmem:[#allocation2 + $0x80] sm:$0xf]
    %v84 = vld [vmem:[#allocation2 + $0x84] sm:$0xf]
    %v85 = vld [vmem:[#allocation2 + $0x88] sm:$0xf]
    %v86 = vld [vmem:[#allocation2 + $0x8c] sm:$0xf]
    %v87 = vld [vmem:[#allocation2 + $0x90] sm:$0xf]
    %v88 = vld [vmem:[#allocation2 + $0x94] sm:$0xf]
    %v89 = vld [vmem:[#allocation2 + $0x98] sm:$0xf]
    %v90 = vld [vmem:[#allocation2 + $0x9c] sm:$0xf]
    %v91 = vld [vmem:[#allocation2 + $0xa0] sm:$0xf]
    %v92 = vld [vmem:[#allocation2 + $0xa4] sm:$0xf]
    %v93 = vld [vmem:[#allocation2 + $0xa8] sm:$0xf]
    %v94 = vld [vmem:[#allocation2 + $0xac] sm:$0xf]
    %v95 = vld [vmem:[#allocation2 + $0xb0] sm:$0xf]
    %v96 = vld [vmem:[#allocation2 + $0xb4] sm:$0xf]
    %v97 = vld [vmem:[#allocation2 + $0xb8] sm:$0xf]
    %v98 = vld [vmem:[#allocation2 + $0xbc] sm:$0xf]
    %v99 = vld [vmem:[#allocation5] sm:$0xf]
    %v100 = vld [vmem:[#allocation5 + $0x4] sm:$0xf]
    %v101 = vld [vmem:[#allocation5 + $0x8] sm:$0xf]
    %v102 = vld [vmem:[#allocation5 + $0xc] sm:$0xf]
    %v103 = vld [vmem:[#allocation5 + $0x10] sm:$0xf]
    %v104 = vld [vmem:[#allocation5 + $0x14] sm:$0xf]
    %v105 = vld [vmem:[#allocation5 + $0x18] sm:$0xf]
    %v106 = vld [vmem:[#allocation5 + $0x1c] sm:$0xf]
    %v107 = vld [vmem:[#allocation5 + $0x20] sm:$0xf]
    %v108 = vld [vmem:[#allocation5 + $0x24] sm:$0xf]
    %v109 = vld [vmem:[#allocation5 + $0x28] sm:$0xf]
    %v110 = vld [vmem:[#allocation5 + $0x2c] sm:$0xf]
    %v111 = vld [vmem:[#allocation5 + $0x30] sm:$0xf]
    %v112 = vld [vmem:[#allocation5 + $0x34] sm:$0xf]
    %v113 = vld [vmem:[#allocation5 + $0x38] sm:$0xf]
    %v114 = vld [vmem:[#allocation5 + $0x3c] sm:$0xf]
    %v163 = vunpack.c.l.b16 %v51
    %v164 = vunpack.c.l.b16 %v52
    %v165 = vunpack.c.l.b16 %v53
    %v166 = vunpack.c.l.b16 %v54
    %v167 = vunpack.c.l.b16 %v55
    %v168 = vunpack.c.l.b16 %v56
    %v169 = vunpack.c.l.b16 %v57
    %v170 = vunpack.c.l.b16 %v58
    %v171 = vunpack.c.l.b16 %v59
    %v172 = vunpack.c.l.b16 %v60
    %v173 = vunpack.c.l.b16 %v61
    %v174 = vunpack.c.l.b16 %v62
    %v175 = vunpack.c.l.b16 %v63
    %v176 = vunpack.c.l.b16 %v64
    %v177 = vunpack.c.l.b16 %v65
    %v178 = vunpack.c.l.b16 %v66
    %v179 = vunpack.c.l.b16 %v67
    %v180 = vunpack.c.l.b16 %v68
    %v181 = vunpack.c.l.b16 %v69
    %v182 = vunpack.c.l.b16 %v70
    %v183 = vunpack.c.l.b16 %v71
    %v184 = vunpack.c.l.b16 %v72
    %v185 = vunpack.c.l.b16 %v73
    %v186 = vunpack.c.l.b16 %v74
    %v187 = vunpack.c.l.b16 %v75
    %v188 = vunpack.c.l.b16 %v76
    %v189 = vunpack.c.l.b16 %v77
    %v190 = vunpack.c.l.b16 %v78
    %v191 = vunpack.c.l.b16 %v79
    %v192 = vunpack.c.l.b16 %v80
    %v193 = vunpack.c.l.b16 %v81
    %v194 = vunpack.c.l.b16 %v82
    %v195 = vunpack.c.l.b16 %v83
    %v196 = vunpack.c.l.b16 %v84
    %v197 = vunpack.c.l.b16 %v85
    %v198 = vunpack.c.l.b16 %v86
    %v199 = vunpack.c.l.b16 %v87
    %v200 = vunpack.c.l.b16 %v88
    %v201 = vunpack.c.l.b16 %v89
    %v202 = vunpack.c.l.b16 %v90
    %v203 = vunpack.c.l.b16 %v91
    %v204 = vunpack.c.l.b16 %v92
    %v205 = vunpack.c.l.b16 %v93
    %v206 = vunpack.c.l.b16 %v94
    %v207 = vunpack.c.l.b16 %v95
    %v208 = vunpack.c.l.b16 %v96
    %v209 = vunpack.c.l.b16 %v97
    %v210 = vunpack.c.l.b16 %v98
    %v211 = vpack.c.b16 %v164, %v163
    %v212 = vpack.c.b16 %v166, %v165
    %v213 = vpack.c.b16 %v168, %v167
    %v214 = vpack.c.b16 %v170, %v169
    %v215 = vpack.c.b16 %v172, %v171
    %v216 = vpack.c.b16 %v174, %v173
    %v217 = vpack.c.b16 %v176, %v175
    %v218 = vpack.c.b16 %v178, %v177
    %v219 = vpack.c.b16 %v180, %v179
    %v220 = vpack.c.b16 %v182, %v181
    %v221 = vpack.c.b16 %v184, %v183
    %v222 = vpack.c.b16 %v186, %v185
    %v223 = vpack.c.b16 %v188, %v187
    %v224 = vpack.c.b16 %v190, %v189
    %v225 = vpack.c.b16 %v192, %v191
    %v226 = vpack.c.b16 %v194, %v193
    %v227 = vpack.c.b16 %v196, %v195
    %v228 = vpack.c.b16 %v198, %v197
    %v229 = vpack.c.b16 %v200, %v199
    %v230 = vpack.c.b16 %v202, %v201
    %v231 = vpack.c.b16 %v204, %v203
    %v232 = vpack.c.b16 %v206, %v205
    %v233 = vpack.c.b16 %v208, %v207
    %v234 = vpack.c.b16 %v210, %v209
    %v275 = vunpack.c.l.b16 %v99
    %v276 = vunpack.c.l.b16 %v100
    %v277 = vunpack.c.l.b16 %v101
    %v278 = vunpack.c.l.b16 %v102
    %v279 = vunpack.c.l.b16 %v103
    %v280 = vunpack.c.l.b16 %v104
    %v281 = vunpack.c.l.b16 %v105
    %v282 = vunpack.c.l.b16 %v106
    %v283 = vunpack.c.l.b16 %v107
    %v284 = vunpack.c.l.b16 %v108
    %v285 = vunpack.c.l.b16 %v109
    %v286 = vunpack.c.l.b16 %v110
    %v287 = vunpack.c.l.b16 %v111
    %v288 = vunpack.c.l.b16 %v112
    %v289 = vunpack.c.l.b16 %v113
    %v290 = vunpack.c.l.b16 %v114
    %v291 = vpack.c.b16 %v276, %v275
    %v292 = vpack.c.b16 %v278, %v277
    %v293 = vpack.c.b16 %v280, %v279
    %v294 = vpack.c.b16 %v282, %v281
    %v295 = vpack.c.b16 %v284, %v283
    %v296 = vpack.c.b16 %v286, %v285
    %v297 = vpack.c.b16 %v288, %v287
    %v298 = vpack.c.b16 %v290, %v289
    %307 = vmatprep.subr.bf16.mxu0 0
    %308 = vmatpush1.bf16.msra.mxu0 %v298
    %309 = vmatprep.subr.bf16.mxu0 0
    %310 = vmatpush1.bf16.msra.mxu0 %v297
    %311 = vmatprep.subr.bf16.mxu0 0
    %312 = vmatpush1.bf16.msra.mxu0 %v296
    %313 = vmatprep.subr.bf16.mxu0 0
    %314 = vmatpush1.bf16.msra.mxu0 %v295
    %315 = vmatprep.subr.bf16.mxu0 0
    %316 = vmatpush1.bf16.msra.mxu0 %v294
    %317 = vmatprep.subr.bf16.mxu0 0
    %318 = vmatpush1.bf16.msra.mxu0 %v293
    %319 = vmatprep.subr.bf16.mxu0 0
    %320 = vmatpush1.bf16.msra.mxu0 %v292
    %321 = vmatprep.subr.bf16.mxu0 0
    %322 = vmatpush1.bf16.msra.mxu0 %v291
    %323 = vmatprep.subr.bf16.mxu0 0
    %324 = vmatpush2.bf16.msra.mxu0 0
    %325 = vmatprep.subr.bf16.mxu0 0
    %326 = vmatpush2.bf16.msra.mxu0 0
    %327 = vmatprep.subr.bf16.mxu0 0
    %328 = vmatpush2.bf16.msra.mxu0 0
    %329 = vmatprep.subr.bf16.mxu0 0
    %330 = vmatpush2.bf16.msra.mxu0 0
    %331 = vmatprep.subr.bf16.mxu0 0
    %332 = vmatpush2.bf16.msra.mxu0 0
    %333 = vmatprep.subr.bf16.mxu0 0
    %334 = vmatpush2.bf16.msra.mxu0 0
    %335 = vmatprep.subr.bf16.mxu0 0
    %336 = vmatpush2.bf16.msra.mxu0 0
    %337 = vmatprep.subr.bf16.mxu0 0
    %338 = vmatpush2.bf16.msra.mxu0 0
    %339 = vmatprep.mubr.bf16.mxu0 0
    %340 = vmatmul.mubr.bf16.gmra.mxu0 %v211
    %v341 = vpop.f32.mrf.mxu0
    %v342 = vadd.f32 0.0, %v341
    %v343 = vpop.f32.mrf.mxu0
    %v344 = vpop.f32.mrf.mxu0
    %v345 = vadd.f32 0.0, %v344
    %v346 = vpop.f32.mrf.mxu0
    %347 = vmatprep.mubr.bf16.mxu0 0
    %348 = vmatmul.mubr.bf16.gmra.mxu0 %v212
    %v349 = vpop.f32.mrf.mxu0
    %v350 = vadd.f32 0.0, %v349
    %v351 = vpop.f32.mrf.mxu0
    %v352 = vpop.f32.mrf.mxu0
    %v353 = vadd.f32 0.0, %v352
    %v354 = vpop.f32.mrf.mxu0
    %355 = vmatprep.mubr.bf16.mxu0 0
    %356 = vmatmul.mubr.bf16.gmra.mxu0 %v213
    %v357 = vpop.f32.mrf.mxu0
    %v358 = vadd.f32 0.0, %v357
    %v359 = vpop.f32.mrf.mxu0
    %v360 = vpop.f32.mrf.mxu0
    %v361 = vadd.f32 0.0, %v360
    %v362 = vpop.f32.mrf.mxu0
    %363 = vmatprep.mubr.bf16.mxu0 0
    %364 = vmatmul.mubr.bf16.gmra.mxu0 %v214
    %v365 = vpop.f32.mrf.mxu0
    %v366 = vadd.f32 0.0, %v365
    %v367 = vpop.f32.mrf.mxu0
    %v368 = vpop.f32.mrf.mxu0
    %v369 = vadd.f32 0.0, %v368
    %v370 = vpop.f32.mrf.mxu0
    %371 = vmatprep.mubr.bf16.mxu0 0
    %372 = vmatmul.mubr.bf16.gmra.mxu0 %v215
    %v373 = vpop.f32.mrf.mxu0
    %v374 = vadd.f32 0.0, %v373
    %v375 = vpop.f32.mrf.mxu0
    %v376 = vpop.f32.mrf.mxu0
    %v377 = vadd.f32 0.0, %v376
    %v378 = vpop.f32.mrf.mxu0
    %379 = vmatprep.mubr.bf16.mxu0 0
    %380 = vmatmul.mubr.bf16.gmra.mxu0 %v216
    %v381 = vpop.f32.mrf.mxu0
    %v382 = vadd.f32 0.0, %v381
    %v383 = vpop.f32.mrf.mxu0
    %v384 = vpop.f32.mrf.mxu0
    %v385 = vadd.f32 0.0, %v384
    %v386 = vpop.f32.mrf.mxu0
    %387 = vmatprep.mubr.bf16.mxu0 0
    %388 = vmatmul.mubr.bf16.gmra.mxu0 %v217
    %v389 = vpop.f32.mrf.mxu0
    %v390 = vadd.f32 0.0, %v389
    %v391 = vpop.f32.mrf.mxu0
    %v392 = vpop.f32.mrf.mxu0
    %v393 = vadd.f32 0.0, %v392
    %v394 = vpop.f32.mrf.mxu0
    %395 = vmatprep.mubr.bf16.mxu0 0
    %396 = vmatmul.mubr.bf16.gmra.mxu0 %v218
    %v397 = vpop.f32.mrf.mxu0
    %v398 = vadd.f32 0.0, %v397
    %v399 = vpop.f32.mrf.mxu0
    %v400 = vpop.f32.mrf.mxu0
    %v401 = vadd.f32 0.0, %v400
    %v402 = vpop.f32.mrf.mxu0
    %403 = vmatprep.mubr.bf16.mxu0 0
    %404 = vmatmul.mubr.bf16.gmra.mxu0 %v219
    %v405 = vpop.f32.mrf.mxu0
    %v406 = vadd.f32 0.0, %v405
    %v407 = vpop.f32.mrf.mxu0
    %v408 = vpop.f32.mrf.mxu0
    %v409 = vadd.f32 0.0, %v408
    %v410 = vpop.f32.mrf.mxu0
    %411 = vmatprep.mubr.bf16.mxu0 0
    %412 = vmatmul.mubr.bf16.gmra.mxu0 %v220
    %v413 = vpop.f32.mrf.mxu0
    %v414 = vadd.f32 0.0, %v413
    %v415 = vpop.f32.mrf.mxu0
    %v416 = vpop.f32.mrf.mxu0
    %v417 = vadd.f32 0.0, %v416
    %v418 = vpop.f32.mrf.mxu0
    %419 = vmatprep.mubr.bf16.mxu0 0
    %420 = vmatmul.mubr.bf16.gmra.mxu0 %v221
    %v421 = vpop.f32.mrf.mxu0
    %v422 = vadd.f32 0.0, %v421
    %v423 = vpop.f32.mrf.mxu0
    %v424 = vpop.f32.mrf.mxu0
    %v425 = vadd.f32 0.0, %v424
    %v426 = vpop.f32.mrf.mxu0
    %427 = vmatprep.mubr.bf16.mxu0 0
    %428 = vmatmul.mubr.bf16.gmra.mxu0 %v222
    %v429 = vpop.f32.mrf.mxu0
    %v430 = vadd.f32 0.0, %v429
    %v431 = vpop.f32.mrf.mxu0
    %v432 = vpop.f32.mrf.mxu0
    %v433 = vadd.f32 0.0, %v432
    %v434 = vpop.f32.mrf.mxu0
    %435 = vmatprep.mubr.bf16.mxu0 0
    %436 = vmatmul.mubr.bf16.gmra.mxu0 %v223
    %v437 = vpop.f32.mrf.mxu0
    %v438 = vadd.f32 0.0, %v437
    %v439 = vpop.f32.mrf.mxu0
    %v440 = vpop.f32.mrf.mxu0
    %v441 = vadd.f32 0.0, %v440
    %v442 = vpop.f32.mrf.mxu0
    %443 = vmatprep.mubr.bf16.mxu0 0
    %444 = vmatmul.mubr.bf16.gmra.mxu0 %v224
    %v445 = vpop.f32.mrf.mxu0
    %v446 = vadd.f32 0.0, %v445
    %v447 = vpop.f32.mrf.mxu0
    %v448 = vpop.f32.mrf.mxu0
    %v449 = vadd.f32 0.0, %v448
    %v450 = vpop.f32.mrf.mxu0
    %451 = vmatprep.mubr.bf16.mxu0 0
    %452 = vmatmul.mubr.bf16.gmra.mxu0 %v225
    %v453 = vpop.f32.mrf.mxu0
    %v454 = vadd.f32 0.0, %v453
    %v455 = vpop.f32.mrf.mxu0
    %v456 = vpop.f32.mrf.mxu0
    %v457 = vadd.f32 0.0, %v456
    %v458 = vpop.f32.mrf.mxu0
    %459 = vmatprep.mubr.bf16.mxu0 0
    %460 = vmatmul.mubr.bf16.gmra.mxu0 %v226
    %v461 = vpop.f32.mrf.mxu0
    %v462 = vadd.f32 0.0, %v461
    %v463 = vpop.f32.mrf.mxu0
    %v464 = vpop.f32.mrf.mxu0
    %v465 = vadd.f32 0.0, %v464
    %v466 = vpop.f32.mrf.mxu0
    %467 = vmatprep.mubr.bf16.mxu0 0
    %468 = vmatmul.mubr.bf16.gmra.mxu0 %v227
    %v469 = vpop.f32.mrf.mxu0
    %v470 = vadd.f32 0.0, %v469
    %v471 = vpop.f32.mrf.mxu0
    %v472 = vpop.f32.mrf.mxu0
    %v473 = vadd.f32 0.0, %v472
    %v474 = vpop.f32.mrf.mxu0
    %475 = vmatprep.mubr.bf16.mxu0 0
    %476 = vmatmul.mubr.bf16.gmra.mxu0 %v228
    %v477 = vpop.f32.mrf.mxu0
    %v478 = vadd.f32 0.0, %v477
    %v479 = vpop.f32.mrf.mxu0
    %v480 = vpop.f32.mrf.mxu0
    %v481 = vadd.f32 0.0, %v480
    %v482 = vpop.f32.mrf.mxu0
    %483 = vmatprep.mubr.bf16.mxu0 0
    %484 = vmatmul.mubr.bf16.gmra.mxu0 %v229
    %v485 = vpop.f32.mrf.mxu0
    %v486 = vadd.f32 0.0, %v485
    %v487 = vpop.f32.mrf.mxu0
    %v488 = vpop.f32.mrf.mxu0
    %v489 = vadd.f32 0.0, %v488
    %v490 = vpop.f32.mrf.mxu0
    %491 = vmatprep.mubr.bf16.mxu0 0
    %492 = vmatmul.mubr.bf16.gmra.mxu0 %v230
    %v493 = vpop.f32.mrf.mxu0
    %v494 = vadd.f32 0.0, %v493
    %v495 = vpop.f32.mrf.mxu0
    %v496 = vpop.f32.mrf.mxu0
    %v497 = vadd.f32 0.0, %v496
    %v498 = vpop.f32.mrf.mxu0
    %499 = vmatprep.mubr.bf16.mxu0 0
    %500 = vmatmul.mubr.bf16.gmra.mxu0 %v231
    %v501 = vpop.f32.mrf.mxu0
    %v502 = vadd.f32 0.0, %v501
    %v503 = vpop.f32.mrf.mxu0
    %v504 = vpop.f32.mrf.mxu0
    %v505 = vadd.f32 0.0, %v504
    %v506 = vpop.f32.mrf.mxu0
    %507 = vmatprep.mubr.bf16.mxu0 0
    %508 = vmatmul.mubr.bf16.gmra.mxu0 %v232
    %v509 = vpop.f32.mrf.mxu0
    %v510 = vadd.f32 0.0, %v509
    %v511 = vpop.f32.mrf.mxu0
    %v512 = vpop.f32.mrf.mxu0
    %v513 = vadd.f32 0.0, %v512
    %v514 = vpop.f32.mrf.mxu0
    %515 = vmatprep.mubr.bf16.mxu0 0
    %516 = vmatmul.mubr.bf16.gmra.mxu0 %v233
    %v517 = vpop.f32.mrf.mxu0
    %v518 = vadd.f32 0.0, %v517
    %v519 = vpop.f32.mrf.mxu0
    %v520 = vpop.f32.mrf.mxu0
    %v521 = vadd.f32 0.0, %v520
    %v522 = vpop.f32.mrf.mxu0
    %523 = vmatprep.mubr.bf16.mxu0 0
    %524 = vmatmul.mubr.bf16.gmra.mxu0 %v234
    %v525 = vpop.f32.mrf.mxu0
    %v526 = vadd.f32 0.0, %v525
    %v527 = vpop.f32.mrf.mxu0
    %v528 = vpop.f32.mrf.mxu0
    %v529 = vadd.f32 0.0, %v528
    %v530 = vpop.f32.mrf.mxu0
    %531 = vdwg.mxu0
    %532 = vst [vmem:[#allocation7] sm:$0xff] %v342
    %533 = vst [vmem:[#allocation7 + $0x8] sm:$0xff] %v345
    %534 = vst [vmem:[#allocation7 + $0x10] sm:$0xff] %v350
    %535 = vst [vmem:[#allocation7 + $0x18] sm:$0xff] %v353
    %536 = vst [vmem:[#allocation7 + $0x20] sm:$0xff] %v358
    %537 = vst [vmem:[#allocation7 + $0x28] sm:$0xff] %v361
    %538 = vst [vmem:[#allocation7 + $0x30] sm:$0xff] %v366
    %539 = vst [vmem:[#allocation7 + $0x38] sm:$0xff] %v369
    %540 = vst [vmem:[#allocation7 + $0x40] sm:$0xff] %v374
    %541 = vst [vmem:[#allocation7 + $0x48] sm:$0xff] %v377
    %542 = vst [vmem:[#allocation7 + $0x50] sm:$0xff] %v382
    %543 = vst [vmem:[#allocation7 + $0x58] sm:$0xff] %v385
    %544 = vst [vmem:[#allocation7 + $0x60] sm:$0xff] %v390
    %545 = vst [vmem:[#allocation7 + $0x68] sm:$0xff] %v393
    %546 = vst [vmem:[#allocation7 + $0x70] sm:$0xff] %v398
    %547 = vst [vmem:[#allocation7 + $0x78] sm:$0xff] %v401
    %548 = vst [vmem:[#allocation7 + $0x80] sm:$0xff] %v406
    %549 = vst [vmem:[#allocation7 + $0x88] sm:$0xff] %v409
    %550 = vst [vmem:[#allocation7 + $0x90] sm:$0xff] %v414
    %551 = vst [vmem:[#allocation7 + $0x98] sm:$0xff] %v417
    %552 = vst [vmem:[#allocation7 + $0xa0] sm:$0xff] %v422
    %553 = vst [vmem:[#allocation7 + $0xa8] sm:$0xff] %v425
    %554 = vst [vmem:[#allocation7 + $0xb0] sm:$0xff] %v430
    %555 = vst [vmem:[#allocation7 + $0xb8] sm:$0xff] %v433
    %556 = vst [vmem:[#allocation7 + $0xc0] sm:$0xff] %v438
    %557 = vst [vmem:[#allocation7 + $0xc8] sm:$0xff] %v441
    %558 = vst [vmem:[#allocation7 + $0xd0] sm:$0xff] %v446
    %559 = vst [vmem:[#allocation7 + $0xd8] sm:$0xff] %v449
    %560 = vst [vmem:[#allocation7 + $0xe0] sm:$0xff] %v454
    %561 = vst [vmem:[#allocation7 + $0xe8] sm:$0xff] %v457
    %562 = vst [vmem:[#allocation7 + $0xf0] sm:$0xff] %v462
    %563 = vst [vmem:[#allocation7 + $0xf8] sm:$0xff] %v465
    %564 = vst [vmem:[#allocation7 + $0x100] sm:$0xff] %v470
    %565 = vst [vmem:[#allocation7 + $0x108] sm:$0xff] %v473
    %566 = vst [vmem:[#allocation7 + $0x110] sm:$0xff] %v478
    %567 = vst [vmem:[#allocation7 + $0x118] sm:$0xff] %v481
    %568 = vst [vmem:[#allocation7 + $0x120] sm:$0xff] %v486
    %569 = vst [vmem:[#allocation7 + $0x128] sm:$0xff] %v489
    %570 = vst [vmem:[#allocation7 + $0x130] sm:$0xff] %v494
    %571 = vst [vmem:[#allocation7 + $0x138] sm:$0xff] %v497
    %572 = vst [vmem:[#allocation7 + $0x140] sm:$0xff] %v502
    %573 = vst [vmem:[#allocation7 + $0x148] sm:$0xff] %v505
    %574 = vst [vmem:[#allocation7 + $0x150] sm:$0xff] %v510
    %575 = vst [vmem:[#allocation7 + $0x158] sm:$0xff] %v513
    %576 = vst [vmem:[#allocation7 + $0x160] sm:$0xff] %v518
    %577 = vst [vmem:[#allocation7 + $0x168] sm:$0xff] %v521
    %578 = vst [vmem:[#allocation7 + $0x170] sm:$0xff] %v526
    %579 = vst [vmem:[#allocation7 + $0x178] sm:$0xff] %v529
    %v580 = vld [vmem:[#allocation8] sm:$0x1]
    %v581 = vadd.f32 %v342, %v345
    %v582 = vadd.f32 %v581, %v350
    %v583 = vadd.f32 %v582, %v353
    %v584 = vadd.f32 %v583, %v358
    %v585 = vadd.f32 %v584, %v361
    %v586 = vadd.f32 %v585, %v366
    %v587 = vadd.f32 %v586, %v369
    %v588 = vadd.f32 %v587, %v374
    %v589 = vadd.f32 %v588, %v377
    %v590 = vadd.f32 %v589, %v382
    %v591 = vadd.f32 %v590, %v385
    %v592 = vadd.f32 %v591, %v390
    %v593 = vadd.f32 %v592, %v393
    %v594 = vadd.f32 %v593, %v398
    %v595 = vadd.f32 %v594, %v401
    %v596 = vadd.f32 %v595, %v406
    %v597 = vadd.f32 %v596, %v409
    %v598 = vadd.f32 %v597, %v414
    %v599 = vadd.f32 %v598, %v417
    %v600 = vadd.f32 %v599, %v422
    %v601 = vadd.f32 %v600, %v425
    %v602 = vadd.f32 %v601, %v430
    %v603 = vadd.f32 %v602, %v433
    %v604 = vadd.f32 %v603, %v438
    %v605 = vadd.f32 %v604, %v441
    %v606 = vadd.f32 %v605, %v446
    %v607 = vadd.f32 %v606, %v449
    %v608 = vadd.f32 %v607, %v454
    %v609 = vadd.f32 %v608, %v457
    %v610 = vadd.f32 %v609, %v462
    %v611 = vadd.f32 %v610, %v465
    %v612 = vadd.f32 %v611, %v470
    %v613 = vadd.f32 %v612, %v473
    %v614 = vadd.f32 %v613, %v478
    %v615 = vadd.f32 %v614, %v481
    %v616 = vadd.f32 %v615, %v486
    %v617 = vadd.f32 %v616, %v489
    %v618 = vadd.f32 %v617, %v494
    %v619 = vadd.f32 %v618, %v497
    %v620 = vadd.f32 %v619, %v502
    %v621 = vadd.f32 %v620, %v505
    %v622 = vadd.f32 %v621, %v510
    %v623 = vadd.f32 %v622, %v513
    %v624 = vadd.f32 %v623, %v518
    %v625 = vadd.f32 %v624, %v521
    %v626 = vadd.f32 %v625, %v526
    %v627 = vadd.f32 %v626, %v529
    %v628 = vrot.slane %v627, 4
    %v629 = vadd.f32 %v627, %v628
    %v630 = vrot.slane %v629, 2
    %v631 = vadd.f32 %v629, %v630
    %v632 = vrot.slane %v631, 1
    %v633 = vadd.f32 %v631, %v632
    %v634 = vadd.f32 %v580, %v633
    %635 = vst [vmem:[#allocation8] sm:$0x1] %v634
    %v636 = vld [vmem:[#allocation10] sm:$0x1]
    %v637 = vmul.f32 %v342, %v342
    %v638 = vmul.f32 %v345, %v345
    %v639 = vmul.f32 %v350, %v350
    %v640 = vmul.f32 %v353, %v353
    %v641 = vmul.f32 %v358, %v358
    %v642 = vmul.f32 %v361, %v361
    %v643 = vmul.f32 %v366, %v366
    %v644 = vmul.f32 %v369, %v369
    %v645 = vmul.f32 %v374, %v374
    %v646 = vmul.f32 %v377, %v377
    %v647 = vmul.f32 %v382, %v382
    %v648 = vmul.f32 %v385, %v385
    %v649 = vmul.f32 %v390, %v390
    %v650 = vmul.f32 %v393, %v393
    %v651 = vmul.f32 %v398, %v398
    %v652 = vmul.f32 %v401, %v401
    %v653 = vmul.f32 %v406, %v406
    %v654 = vmul.f32 %v409, %v409
    %v655 = vmul.f32 %v414, %v414
    %v656 = vmul.f32 %v417, %v417
    %v657 = vmul.f32 %v422, %v422
    %v658 = vmul.f32 %v425, %v425
    %v659 = vmul.f32 %v430, %v430
    %v660 = vmul.f32 %v433, %v433
    %v661 = vmul.f32 %v438, %v438
    %v662 = vmul.f32 %v441, %v441
    %v663 = vmul.f32 %v446, %v446
    %v664 = vmul.f32 %v449, %v449
    %v665 = vmul.f32 %v454, %v454
    %v666 = vmul.f32 %v457, %v457
    %v667 = vmul.f32 %v462, %v462
    %v668 = vmul.f32 %v465, %v465
    %v669 = vmul.f32 %v470, %v470
    %v670 = vmul.f32 %v473, %v473
    %v671 = vmul.f32 %v478, %v478
    %v672 = vmul.f32 %v481, %v481
    %v673 = vmul.f32 %v486, %v486
    %v674 = vmul.f32 %v489, %v489
    %v675 = vmul.f32 %v494, %v494
    %v676 = vmul.f32 %v497, %v497
    %v677 = vmul.f32 %v502, %v502
    %v678 = vmul.f32 %v505, %v505
    %v679 = vmul.f32 %v510, %v510
    %v680 = vmul.f32 %v513, %v513
    %v681 = vmul.f32 %v518, %v518
    %v682 = vmul.f32 %v521, %v521
    %v683 = vmul.f32 %v526, %v526
    %v684 = vmul.f32 %v529, %v529
    %v685 = vadd.f32 %v637, %v638
    %v686 = vadd.f32 %v685, %v639
    %v687 = vadd.f32 %v686, %v640
    %v688 = vadd.f32 %v687, %v641
    %v689 = vadd.f32 %v688, %v642
    %v690 = vadd.f32 %v689, %v643
    %v691 = vadd.f32 %v690, %v644
    %v692 = vadd.f32 %v691, %v645
    %v693 = vadd.f32 %v692, %v646
    %v694 = vadd.f32 %v693, %v647
    %v695 = vadd.f32 %v694, %v648
    %v696 = vadd.f32 %v695, %v649
    %v697 = vadd.f32 %v696, %v650
    %v698 = vadd.f32 %v697, %v651
    %v699 = vadd.f32 %v698, %v652
    %v700 = vadd.f32 %v699, %v653
    %v701 = vadd.f32 %v700, %v654
    %v702 = vadd.f32 %v701, %v655
    %v703 = vadd.f32 %v702, %v656
    %v704 = vadd.f32 %v703, %v657
    %v705 = vadd.f32 %v704, %v658
    %v706 = vadd.f32 %v705, %v659
    %v707 = vadd.f32 %v706, %v660
    %v708 = vadd.f32 %v707, %v661
    %v709 = vadd.f32 %v708, %v662
    %v710 = vadd.f32 %v709, %v663
    %v711 = vadd.f32 %v710, %v664
    %v712 = vadd.f32 %v711, %v665
    %v713 = vadd.f32 %v712, %v666
    %v714 = vadd.f32 %v713, %v667
    %v715 = vadd.f32 %v714, %v668
    %v716 = vadd.f32 %v715, %v669
    %v717 = vadd.f32 %v716, %v670
    %v718 = vadd.f32 %v717, %v671
    %v719 = vadd.f32 %v718, %v672
    %v720 = vadd.f32 %v719, %v673
    %v721 = vadd.f32 %v720, %v674
    %v722 = vadd.f32 %v721, %v675
    %v723 = vadd.f32 %v722, %v676
    %v724 = vadd.f32 %v723, %v677
    %v725 = vadd.f32 %v724, %v678
    %v726 = vadd.f32 %v725, %v679
    %v727 = vadd.f32 %v726, %v680
    %v728 = vadd.f32 %v727, %v681
    %v729 = vadd.f32 %v728, %v682
    %v730 = vadd.f32 %v729, %v683
    %v731 = vadd.f32 %v730, %v684
    %v732 = vrot.slane %v731, 4
    %v733 = vadd.f32 %v731, %v732
    %v734 = vrot.slane %v733, 2
    %v735 = vadd.f32 %v733, %v734
    %v736 = vrot.slane %v735, 1
    %v737 = vadd.f32 %v735, %v736
    %v738 = vadd.f32 %v636, %v737
    %739 = vst [vmem:[#allocation10] sm:$0x1] %v738
    // Predicated region
    $region22: #{tpu_custom_call.1} parent=1 // pred_check
      _
    $region23: #{tpu_custom_call.1} parent=1 // pred_check_branch
      %741 = sbr.rel (0) target = $region25
    $region24: #{tpu_custom_call.1} parent=1 // pred_region
      %s743 = ssub.s32 6144, 6144
      %744 = vsyncadd [#allocation4], %s743
      %s745 = sshll.u32 [#allocation7], 4
      %s746 = int_to_ptr.vmem [resolvable:$true] %s745
      %751 = dma.vmem_to_hbm [thread:$0]  %s746, 6144, %s2, [#allocation4], 128, 128, 8
    $region25: #{tpu_custom_call.1} parent=1 // pred_fallthru
      _
    // Predicated region
    $region26: #{tpu_custom_call.1} parent=1 // pred_check
      _
    $region27: #{tpu_custom_call.1} parent=1 // pred_check_branch
      %753 = sbr.rel (0) target = $region29
    $region28: #{tpu_custom_call.1} parent=1 // pred_region
      %s755 = ssub.s32 16, 16
      %756 = vsyncadd [#allocation9], %s755
      %s758 = sshll.u32 [#allocation8], 4
      %s759 = int_to_ptr.vmem [resolvable:$true] %s758
      %761 = dma.vmem_to_hbm [thread:$0]  %s759, 16, %s3, [#allocation9]
    $region29: #{tpu_custom_call.1} parent=1 // pred_fallthru
      _
    // Predicated region
    $region30: #{tpu_custom_call.1} parent=1 // pred_check
      _
    $region31: #{tpu_custom_call.1} parent=1 // pred_check_branch
      %763 = sbr.rel (0) target = $region33
    $region32: #{tpu_custom_call.1} parent=1 // pred_region
      %s765 = ssub.s32 16, 16
      %766 = vsyncadd [#allocation9], %s765
      %s768 = sshll.u32 [#allocation10], 4
      %s769 = int_to_ptr.vmem [resolvable:$true] %s768
      %771 = dma.vmem_to_hbm [thread:$0]  %s769, 16, %s4, [#allocation9]
    $region33: #{tpu_custom_call.1} parent=1 // pred_fallthru
      _
    // Predicated region
    $region34: #{tpu_custom_call.1} parent=1 // pred_check
      _
    $region35: #{tpu_custom_call.1} parent=1 // pred_check_branch
      %773 = sbr.rel (0) target = $region37
    $region36: #{tpu_custom_call.1} parent=1 // pred_region
      %774 = dma.done [#allocation4], 6144
    $region37: #{tpu_custom_call.1} parent=1 // pred_fallthru
      _
    // Predicated region
    $region38: #{tpu_custom_call.1} parent=1 // pred_check
      _
    $region39: #{tpu_custom_call.1} parent=1 // pred_check_branch
      %776 = sbr.rel (0) target = $region41
    $region40: #{tpu_custom_call.1} parent=1 // pred_region
      %777 = dma.done [#allocation9], 16
    $region41: #{tpu_custom_call.1} parent=1 // pred_fallthru
      _
    // Predicated region
    $region42: #{tpu_custom_call.1} parent=1 // pred_check
      _
    $region43: #{tpu_custom_call.1} parent=1 // pred_check_branch
      %779 = sbr.rel (0) target = $region45
    $region44: #{tpu_custom_call.1} parent=1 // pred_region
      %780 = dma.done [#allocation9], 16
    $region45: #{tpu_custom_call.1} parent=1 // pred_fallthru
      _
    %781 = vsyncpa [#allocation3], 1
    %782 = vsyncpa [#allocation6], 1
    %783 = vsyncpa [#allocation4], 1
    %784 = vsyncpa [#allocation9], 1

</llo_original>
